<compile_context>
chip_gen: v5e
topology: v5e:2x2
jax: 0.10.0
libtpu: 0.0.40
codegen_flags: <defaults>
</compile_context>

<pallas_src>
import jax
import jax.numpy as jnp
from jax.experimental import pallas as pl
from jax.experimental.pallas import tpu as pltpu


# Row offsets of the sub-arrays packed into the "misc" buffer.  Every packed
# weight starts at a multiple-of-8 row so in-kernel static slices stay
# sublane-tile aligned.
_B1X_ROW, _B2X_ROW, _B1_ROW, _B2_ROW, _B3_ROW, _B4_ROW = 0, 1, 2, 3, 4, 5
_W1X_ROW, _W2X_ROW, _W3A_ROW = 8, 16, 32
_MISC_ROWS, _MISC_COLS = 40, 512


def policy_kernel(xr_ref, xb_ref, misc_ref, w1_ref, w2_ref, w3b_ref, w4_ref,
                  out_ref):
    # xr_ref : (B*R, 3)   per-region rows [s0, s1, goal]
    # xb_ref : (B*R, 3R)  flattened x, each batch row duplicated R times
    # misc   : packed biases + small weights (w1x, w2x, w3a)
    xr = xr_ref[...]
    xb = xb_ref[...]

    w1x = misc_ref[_W1X_ROW:_W1X_ROW + 3, 0:15]      # (3, 15)
    w2x = misc_ref[_W2X_ROW:_W2X_ROW + 15, 0:5]      # (15, 5)
    w3a = misc_ref[_W3A_ROW:_W3A_ROW + 5, 0:400]     # (5, 400)
    b1x = misc_ref[_B1X_ROW:_B1X_ROW + 1, 0:15]
    b2x = misc_ref[_B2X_ROW:_B2X_ROW + 1, 0:5]
    b1 = misc_ref[_B1_ROW:_B1_ROW + 1, 0:512]
    b2 = misc_ref[_B2_ROW:_B2_ROW + 1, 0:95]
    b3 = misc_ref[_B3_ROW:_B3_ROW + 1, 0:400]
    b4 = misc_ref[_B4_ROW:_B4_ROW + 1, 0:2]

    # hidden_x: Linear(3,15) -> Tanh -> Linear(15,5), applied per region.
    # K=3 contraction as VPU broadcast-FMAs (MXU at K=3 is pure waste).
    h1 = jnp.tanh(xr[:, 0:1] * w1x[0:1, :]
                  + xr[:, 1:2] * w1x[1:2, :]
                  + xr[:, 2:3] * w1x[2:3, :] + b1x)                       # (BR,15)
    hid_x = jnp.dot(h1, w2x, preferred_element_type=jnp.float32) + b2x    # (BR,5)

    # hidden: Linear(3R,512) -> Tanh -> Linear(512,95).  Rows of xb are
    # already duplicated per region, so `hid` is row-aligned with `hid_x`.
    g1 = jnp.tanh(jnp.dot(xb, w1_ref[...],
                          preferred_element_type=jnp.float32) + b1)       # (BR,512)
    hid = jnp.dot(g1, w2_ref[...],
                  preferred_element_type=jnp.float32) + b2                # (BR,95)

    # out: Tanh -> Linear(100,400) -> Tanh -> Linear(400,2)
    ya = jnp.dot(jnp.tanh(hid_x), w3a, preferred_element_type=jnp.float32)
    yb = jnp.dot(jnp.tanh(hid), w3b_ref[...],
                 preferred_element_type=jnp.float32)
    y = jnp.tanh(ya + yb + b3)                                            # (BR,400)
    out_ref[...] = (jnp.dot(y, w4_ref[...],
                            preferred_element_type=jnp.float32) + b4)     # (BR,2)


def pack_params(p):
    """One-time repack of the 13 Linear params into 5 kernel inputs."""
    misc = jnp.zeros((_MISC_ROWS, _MISC_COLS), jnp.float32)
    misc = misc.at[_B1X_ROW, :15].set(p["b1x"][0])
    misc = misc.at[_B2X_ROW, :5].set(p["b2x"][0])
    misc = misc.at[_B1_ROW, :512].set(p["b1"][0])
    misc = misc.at[_B2_ROW, :95].set(p["b2"][0])
    misc = misc.at[_B3_ROW, :400].set(p["b3"][0])
    misc = misc.at[_B4_ROW, :2].set(p["b4"][0])
    misc = misc.at[_W1X_ROW:_W1X_ROW + 3, :15].set(p["w1x"])
    misc = misc.at[_W2X_ROW:_W2X_ROW + 15, :5].set(p["w2x"])
    misc = misc.at[_W3A_ROW:_W3A_ROW + 5, :400].set(p["w3"][:5, :])
    return dict(misc=misc, w1=p["w1"], w2=p["w2"],
                w3b=p["w3"][5:, :], w4=p["w4"])


@jax.jit
def policy_forward(states, goals, packed):
    B, R, _ = states.shape
    x = jnp.concatenate([states, goals[..., None]], axis=-1)              # (B,R,3)
    xr = x.reshape(B * R, 3)                                              # region rows
    xb = jnp.broadcast_to(x.reshape(B, 1, 3 * R),
                          (B, R, 3 * R)).reshape(B * R, 3 * R)            # dup rows

    misc, w1, w2, w3b, w4 = (packed["misc"], packed["w1"], packed["w2"],
                             packed["w3b"], packed["w4"])

    def full(arr):
        nd = arr.ndim
        return pl.BlockSpec(arr.shape, lambda i, _nd=nd: (0,) * _nd)

    out = pl.pallas_call(
        policy_kernel,
        out_shape=jax.ShapeDtypeStruct((B * R, 2), jnp.float32),
        grid_spec=pltpu.PrefetchScalarGridSpec(
            num_scalar_prefetch=0,
            grid=(1,),                                   # single program
            in_specs=[full(xr), full(xb), full(misc), full(w1),
                      full(w2), full(w3b), full(w4)],
            out_specs=pl.BlockSpec((B * R, 2), lambda i: (0, 0)),
        ),
        compiler_params=pltpu.CompilerParams(
            dimension_semantics=("arbitrary",)),
    )(xr, xb, misc, w1, w2, w3b, w4)
    return out.reshape(B, R, 2)


def policy_ref(states, goals, p):
    # Pure-JAX reference mirroring the PyTorch forward exactly.
    x = jnp.concatenate([states, goals[..., None]], axis=-1)
    B, R, _ = x.shape
    hid_x = jnp.tanh(x @ p["w1x"] + p["b1x"]) @ p["w2x"] + p["b2x"]           # (B,R,5)
    hid = jnp.tanh(x.reshape(B, -1) @ p["w1"] + p["b1"]) @ p["w2"] + p["b2"]  # (B,95)
    feat = jnp.concatenate(
        [hid_x, jnp.broadcast_to(hid[:, None, :], (B, R, hid.shape[-1]))], axis=-1)
    y = jnp.tanh(jnp.tanh(feat) @ p["w3"] + p["b3"])
    return y @ p["w4"] + p["b4"]


def init_params(key, n_regions):
    ks = jax.random.split(key, 6)

    def linear(k, fan_in, fan_out):
        kw, kb = jax.random.split(k)
        bound = 1.0 / jnp.sqrt(jnp.float32(fan_in))
        w = jax.random.uniform(kw, (fan_in, fan_out), jnp.float32, -bound, bound)
        b = jax.random.uniform(kb, (1, fan_out), jnp.float32, -bound, bound)
        return w, b

    w1x, b1x = linear(ks[0], 3, 15)
    w2x, b2x = linear(ks[1], 15, 5)
    w1, b1 = linear(ks[2], 3 * n_regions, 512)
    w2, b2 = linear(ks[3], 512, 95)
    w3, b3 = linear(ks[4], 100, 400)
    w4, b4 = linear(ks[5], 400, 2)
    return dict(w1x=w1x, b1x=b1x, w2x=w2x, b2x=b2x,
                w1=w1, b1=b1, w2=w2, b2=b2,
                w3=w3, b3=b3, w4=w4, b4=b4)


if __name__ == "__main__":
    B, R = 2, 8                       # batch=2, n_regions=8
    key = jax.random.PRNGKey(0)
    k_states, k_goals, k_params = jax.random.split(key, 3)

    states = jax.random.normal(k_states, (B, R, 2), jnp.float32)
    goals = jax.random.normal(k_goals, (B, R), jnp.float32)
    params = init_params(k_params, R)
    packed = pack_params(params)      # one-time weight repacking

    logits = policy_forward(states, goals, packed)
    jax.block_until_ready(logits)

    expected = policy_ref(states, goals, params)
    assert logits.shape == (B, R, 2), logits.shape
    assert jnp.allclose(logits, expected, atol=1e-4, rtol=1e-4), (
        float(jnp.max(jnp.abs(logits - expected))))
    print("KERNEL_OK")
</pallas_src>

<mosaic_0001>
module attributes {stable_mosaic.version = 11 : i64} {
  func.func @policy_kernel(%arg0: i32, %arg1: memref<16x3xf32, #tpu.memory_space<vmem>>, %arg2: memref<16x24xf32, #tpu.memory_space<vmem>>, %arg3: memref<40x512xf32, #tpu.memory_space<vmem>>, %arg4: memref<24x512xf32, #tpu.memory_space<vmem>>, %arg5: memref<512x95xf32, #tpu.memory_space<vmem>>, %arg6: memref<95x400xf32, #tpu.memory_space<vmem>>, %arg7: memref<400x2xf32, #tpu.memory_space<vmem>>, %arg8: memref<16x2xf32, #tpu.memory_space<vmem>>) attributes {dimension_semantics = [#tpu.dimension_semantics<arbitrary>], iteration_bounds = array<i64: 1>, scalar_prefetch = 0 : i64, scratch_operands = 0 : i64, tpu.core_type = #tpu.core_type<tc>, window_params = [{pipeline_mode = #tpu.pipeline_mode<synchronous>, transform_indices = @transform_0, window_bounds = array<i64: 16, 3>}, {pipeline_mode = #tpu.pipeline_mode<synchronous>, transform_indices = @transform_1, window_bounds = array<i64: 16, 24>}, {pipeline_mode = #tpu.pipeline_mode<synchronous>, transform_indices = @transform_2, window_bounds = array<i64: 40, 512>}, {pipeline_mode = #tpu.pipeline_mode<synchronous>, transform_indices = @transform_3, window_bounds = array<i64: 24, 512>}, {pipeline_mode = #tpu.pipeline_mode<synchronous>, transform_indices = @transform_4, window_bounds = array<i64: 512, 95>}, {pipeline_mode = #tpu.pipeline_mode<synchronous>, transform_indices = @transform_5, window_bounds = array<i64: 95, 400>}, {pipeline_mode = #tpu.pipeline_mode<synchronous>, transform_indices = @transform_6, window_bounds = array<i64: 400, 2>}, {pipeline_mode = #tpu.pipeline_mode<synchronous>, transform_indices = @transform_7, window_bounds = array<i64: 16, 2>}]} {
    %c0 = arith.constant 0 : index
    %c0_0 = arith.constant 0 : index
    %0 = vector.load %arg1[%c0, %c0_0] : memref<16x3xf32, #tpu.memory_space<vmem>>, vector<16x3xf32>
    %c0_1 = arith.constant 0 : index
    %c0_2 = arith.constant 0 : index
    %1 = vector.load %arg2[%c0_1, %c0_2] : memref<16x24xf32, #tpu.memory_space<vmem>>, vector<16x24xf32>
    %c8 = arith.constant 8 : index
    %c0_3 = arith.constant 0 : index
    %2 = vector.load %arg3[%c8, %c0_3] : memref<40x512xf32, #tpu.memory_space<vmem>>, vector<3x15xf32>
    %c16 = arith.constant 16 : index
    %c0_4 = arith.constant 0 : index
    %3 = vector.load %arg3[%c16, %c0_4] : memref<40x512xf32, #tpu.memory_space<vmem>>, vector<15x5xf32>
    %c32 = arith.constant 32 : index
    %c0_5 = arith.constant 0 : index
    %4 = vector.load %arg3[%c32, %c0_5] : memref<40x512xf32, #tpu.memory_space<vmem>>, vector<5x400xf32>
    %c0_6 = arith.constant 0 : index
    %c0_7 = arith.constant 0 : index
    %5 = vector.load %arg3[%c0_6, %c0_7] : memref<40x512xf32, #tpu.memory_space<vmem>>, vector<1x15xf32>
    %c1 = arith.constant 1 : index
    %c0_8 = arith.constant 0 : index
    %6 = vector.load %arg3[%c1, %c0_8] : memref<40x512xf32, #tpu.memory_space<vmem>>, vector<1x5xf32>
    %c2 = arith.constant 2 : index
    %c0_9 = arith.constant 0 : index
    %7 = vector.load %arg3[%c2, %c0_9] : memref<40x512xf32, #tpu.memory_space<vmem>>, vector<1x512xf32>
    %c3 = arith.constant 3 : index
    %c0_10 = arith.constant 0 : index
    %8 = vector.load %arg3[%c3, %c0_10] : memref<40x512xf32, #tpu.memory_space<vmem>>, vector<1x95xf32>
    %c4 = arith.constant 4 : index
    %c0_11 = arith.constant 0 : index
    %9 = vector.load %arg3[%c4, %c0_11] : memref<40x512xf32, #tpu.memory_space<vmem>>, vector<1x400xf32>
    %c5 = arith.constant 5 : index
    %c0_12 = arith.constant 0 : index
    %10 = vector.load %arg3[%c5, %c0_12] : memref<40x512xf32, #tpu.memory_space<vmem>>, vector<1x2xf32>
    %11 = vector.extract_strided_slice %0 {offsets = [0, 0], sizes = [16, 1], strides = [1, 1]} : vector<16x3xf32> to vector<16x1xf32>
    %12 = vector.extract_strided_slice %2 {offsets = [0, 0], sizes = [1, 15], strides = [1, 1]} : vector<3x15xf32> to vector<1x15xf32>
    %13 = vector.broadcast %11 : vector<16x1xf32> to vector<16x15xf32>
    %14 = vector.broadcast %12 : vector<1x15xf32> to vector<16x15xf32>
    %15 = arith.mulf %13, %14 : vector<16x15xf32>
    %16 = vector.extract_strided_slice %0 {offsets = [0, 1], sizes = [16, 1], strides = [1, 1]} : vector<16x3xf32> to vector<16x1xf32>
    %17 = vector.extract_strided_slice %2 {offsets = [1, 0], sizes = [1, 15], strides = [1, 1]} : vector<3x15xf32> to vector<1x15xf32>
    %18 = vector.broadcast %16 : vector<16x1xf32> to vector<16x15xf32>
    %19 = vector.broadcast %17 : vector<1x15xf32> to vector<16x15xf32>
    %20 = arith.mulf %18, %19 : vector<16x15xf32>
    %21 = arith.addf %15, %20 : vector<16x15xf32>
    %22 = vector.extract_strided_slice %0 {offsets = [0, 2], sizes = [16, 1], strides = [1, 1]} : vector<16x3xf32> to vector<16x1xf32>
    %23 = vector.extract_strided_slice %2 {offsets = [2, 0], sizes = [1, 15], strides = [1, 1]} : vector<3x15xf32> to vector<1x15xf32>
    %24 = vector.broadcast %22 : vector<16x1xf32> to vector<16x15xf32>
    %25 = vector.broadcast %23 : vector<1x15xf32> to vector<16x15xf32>
    %26 = arith.mulf %24, %25 : vector<16x15xf32>
    %27 = arith.addf %21, %26 : vector<16x15xf32>
    %28 = vector.broadcast %5 : vector<1x15xf32> to vector<16x15xf32>
    %29 = arith.addf %27, %28 : vector<16x15xf32>
    %30 = math.tanh %29 : vector<16x15xf32>
    %cst = arith.constant dense<0.000000e+00> : vector<16x5xf32>
    %31 = tpu.matmul %30, %3, %cst {dimension_numbers = #tpu.dot_dimension_numbers<[1], [0], [0], [1], [0, 0, 1, 1], [], []>} : vector<16x15xf32>, vector<15x5xf32>, vector<16x5xf32> -> vector<16x5xf32>
    %32 = vector.broadcast %6 : vector<1x5xf32> to vector<16x5xf32>
    %33 = arith.addf %31, %32 : vector<16x5xf32>
    %c0_13 = arith.constant 0 : index
    %c0_14 = arith.constant 0 : index
    %34 = vector.load %arg4[%c0_13, %c0_14] : memref<24x512xf32, #tpu.memory_space<vmem>>, vector<24x512xf32>
    %cst_15 = arith.constant dense<0.000000e+00> : vector<16x512xf32>
    %35 = tpu.matmul %1, %34, %cst_15 {dimension_numbers = #tpu.dot_dimension_numbers<[1], [0], [0], [1], [0, 0, 1, 1], [], []>} : vector<16x24xf32>, vector<24x512xf32>, vector<16x512xf32> -> vector<16x512xf32>
    %36 = vector.broadcast %7 : vector<1x512xf32> to vector<16x512xf32>
    %37 = arith.addf %35, %36 : vector<16x512xf32>
    %38 = math.tanh %37 : vector<16x512xf32>
    %c0_16 = arith.constant 0 : index
    %c0_17 = arith.constant 0 : index
    %39 = vector.load %arg5[%c0_16, %c0_17] : memref<512x95xf32, #tpu.memory_space<vmem>>, vector<512x95xf32>
    %cst_18 = arith.constant dense<0.000000e+00> : vector<16x95xf32>
    %40 = tpu.matmul %38, %39, %cst_18 {dimension_numbers = #tpu.dot_dimension_numbers<[1], [0], [0], [1], [0, 0, 1, 1], [], []>} : vector<16x512xf32>, vector<512x95xf32>, vector<16x95xf32> -> vector<16x95xf32>
    %41 = vector.broadcast %8 : vector<1x95xf32> to vector<16x95xf32>
    %42 = arith.addf %40, %41 : vector<16x95xf32>
    %43 = math.tanh %33 : vector<16x5xf32>
    %cst_19 = arith.constant dense<0.000000e+00> : vector<16x400xf32>
    %44 = tpu.matmul %43, %4, %cst_19 {dimension_numbers = #tpu.dot_dimension_numbers<[1], [0], [0], [1], [0, 0, 1, 1], [], []>} : vector<16x5xf32>, vector<5x400xf32>, vector<16x400xf32> -> vector<16x400xf32>
    %45 = math.tanh %42 : vector<16x95xf32>
    %c0_20 = arith.constant 0 : index
    %c0_21 = arith.constant 0 : index
    %46 = vector.load %arg6[%c0_20, %c0_21] : memref<95x400xf32, #tpu.memory_space<vmem>>, vector<95x400xf32>
    %cst_22 = arith.constant dense<0.000000e+00> : vector<16x400xf32>
    %47 = tpu.matmul %45, %46, %cst_22 {dimension_numbers = #tpu.dot_dimension_numbers<[1], [0], [0], [1], [0, 0, 1, 1], [], []>} : vector<16x95xf32>, vector<95x400xf32>, vector<16x400xf32> -> vector<16x400xf32>
    %48 = arith.addf %44, %47 : vector<16x400xf32>
    %49 = vector.broadcast %9 : vector<1x400xf32> to vector<16x400xf32>
    %50 = arith.addf %48, %49 : vector<16x400xf32>
    %51 = math.tanh %50 : vector<16x400xf32>
    %c0_23 = arith.constant 0 : index
    %c0_24 = arith.constant 0 : index
    %52 = vector.load %arg7[%c0_23, %c0_24] : memref<400x2xf32, #tpu.memory_space<vmem>>, vector<400x2xf32>
    %cst_25 = arith.constant dense<0.000000e+00> : vector<16x2xf32>
    %53 = tpu.matmul %51, %52, %cst_25 {dimension_numbers = #tpu.dot_dimension_numbers<[1], [0], [0], [1], [0, 0, 1, 1], [], []>} : vector<16x400xf32>, vector<400x2xf32>, vector<16x2xf32> -> vector<16x2xf32>
    %54 = vector.broadcast %10 : vector<1x2xf32> to vector<16x2xf32>
    %55 = arith.addf %53, %54 : vector<16x2xf32>
    %c0_26 = arith.constant 0 : index
    %c0_27 = arith.constant 0 : index
    %56 = vector.load %arg8[%c0_26, %c0_27] : memref<16x2xf32, #tpu.memory_space<vmem>>, vector<16x2xf32>
    tpu.vector_store %arg8[%c0_26, %c0_27], %55 {strides = array<i32>} : memref<16x2xf32, #tpu.memory_space<vmem>>, vector<16x2xf32>,
    return
  }
  func.func @transform_0(%arg0: i32) -> (i32, i32) {
    %c0_i32 = arith.constant 0 : i32
    %c0_i32_0 = arith.constant 0 : i32
    %c0_i32_1 = arith.constant 0 : i32
    return %c0_i32, %c0_i32_0 : i32, i32
  }
  func.func @transform_1(%arg0: i32) -> (i32, i32) {
    %c0_i32 = arith.constant 0 : i32
    %c0_i32_0 = arith.constant 0 : i32
    %c0_i32_1 = arith.constant 0 : i32
    return %c0_i32, %c0_i32_0 : i32, i32
  }
  func.func @transform_2(%arg0: i32) -> (i32, i32) {
    %c0_i32 = arith.constant 0 : i32
    %c0_i32_0 = arith.constant 0 : i32
    %c0_i32_1 = arith.constant 0 : i32
    return %c0_i32, %c0_i32_0 : i32, i32
  }
  func.func @transform_3(%arg0: i32) -> (i32, i32) {
    %c0_i32 = arith.constant 0 : i32
    %c0_i32_0 = arith.constant 0 : i32
    %c0_i32_1 = arith.constant 0 : i32
    return %c0_i32, %c0_i32_0 : i32, i32
  }
  func.func @transform_4(%arg0: i32) -> (i32, i32) {
    %c0_i32 = arith.constant 0 : i32
    %c0_i32_0 = arith.constant 0 : i32
    %c0_i32_1 = arith.constant 0 : i32
    return %c0_i32, %c0_i32_0 : i32, i32
  }
  func.func @transform_5(%arg0: i32) -> (i32, i32) {
    %c0_i32 = arith.constant 0 : i32
    %c0_i32_0 = arith.constant 0 : i32
    %c0_i32_1 = arith.constant 0 : i32
    return %c0_i32, %c0_i32_0 : i32, i32
  }
  func.func @transform_6(%arg0: i32) -> (i32, i32) {
    %c0_i32 = arith.constant 0 : i32
    %c0_i32_0 = arith.constant 0 : i32
    %c0_i32_1 = arith.constant 0 : i32
    return %c0_i32, %c0_i32_0 : i32, i32
  }
  func.func @transform_7(%arg0: i32) -> (i32, i32) {
    %c0_i32 = arith.constant 0 : i32
    %c0_i32_0 = arith.constant 0 : i32
    %c0_i32_1 = arith.constant 0 : i32
    return %c0_i32, %c0_i32_0 : i32, i32
  }
}

</mosaic_0001>

<llo_original>
// kernel: policy_forward.1
$region0: #{policy_forward.1}
  #allocation0 [shape = 'u32[]', space=smem, size = 0x4, offset = 0x4, fixed_abs, tag = 'smem constant byte address 0x4 - core index']
  #allocation1 [shape = 'u32[72,128]{1,0:T(1,128)}', space=vmem, size = 0x9000, scoped, tag = 'internal scratch']
  %s0 = inlined_call_operand.vmem [shape: f32[16,3], index: 0, kind: input, shape index: {}]
  %s1 = inlined_call_operand.vmem [shape: f32[16,24], index: 1, kind: input, shape index: {}]
  %s2 = inlined_call_operand.vmem [shape: f32[40,512], index: 2, kind: input, shape index: {}]
  %s3 = inlined_call_operand.vmem [shape: f32[24,512], index: 3, kind: input, shape index: {}]
  %s4 = inlined_call_operand.vmem [shape: f32[512,95], index: 4, kind: input, shape index: {}]
  %s5 = inlined_call_operand.vmem [shape: f32[95,400], index: 5, kind: input, shape index: {}]
  %s6 = inlined_call_operand.vmem [shape: f32[400,2], index: 6, kind: input, shape index: {}]
  %s7 = inlined_call_operand.vmem [shape: f32[16,2], index: 7, kind: output, shape index: {}]
  %s8 = sld [smem:[#allocation0]]
  $region38: #{policy_forward.1} parent=0
    _
  %s10 = ssub.s32 1, %s8
  %s11 = scalar_select 0, %s10, %s8
  // Predicated region
  $region2: #{policy_forward.1} parent=0 // pred_check
    _
  $region3: #{policy_forward.1} parent=0 // pred_check_branch
    %13 = sbr.rel (0) target = $region5
  $region4: #{policy_forward.1} parent=0 // pred_region
    _
  $region5: #{policy_forward.1} parent=0 // pred_fallthru
    _
  // Predicated region
  $region6: #{policy_forward.1} parent=0 // pred_check
    _
  $region7: #{policy_forward.1} parent=0 // pred_check_branch
    %15 = sbr.rel (0) target = $region9
  $region8: #{policy_forward.1} parent=0 // pred_region
    _
  $region9: #{policy_forward.1} parent=0 // pred_fallthru
    _
  // Predicated region
  $region10: #{policy_forward.1} parent=0 // pred_check
    _
  $region11: #{policy_forward.1} parent=0 // pred_check_branch
    %17 = sbr.rel (0) target = $region13
  $region12: #{policy_forward.1} parent=0 // pred_region
    _
  $region13: #{policy_forward.1} parent=0 // pred_fallthru
    _
  // Predicated region
  $region14: #{policy_forward.1} parent=0 // pred_check
    _
  $region15: #{policy_forward.1} parent=0 // pred_check_branch
    %19 = sbr.rel (0) target = $region17
  $region16: #{policy_forward.1} parent=0 // pred_region
    _
  $region17: #{policy_forward.1} parent=0 // pred_fallthru
    _
  // Predicated region
  $region18: #{policy_forward.1} parent=0 // pred_check
    _
  $region19: #{policy_forward.1} parent=0 // pred_check_branch
    %21 = sbr.rel (0) target = $region21
  $region20: #{policy_forward.1} parent=0 // pred_region
    _
  $region21: #{policy_forward.1} parent=0 // pred_fallthru
    _
  // Predicated region
  $region22: #{policy_forward.1} parent=0 // pred_check
    _
  $region23: #{policy_forward.1} parent=0 // pred_check_branch
    %23 = sbr.rel (0) target = $region25
  $region24: #{policy_forward.1} parent=0 // pred_region
    _
  $region25: #{policy_forward.1} parent=0 // pred_fallthru
    _
  // Predicated region
  $region26: #{policy_forward.1} parent=0 // pred_check
    _
  $region27: #{policy_forward.1} parent=0 // pred_check_branch
    %25 = sbr.rel (0) target = $region29
  $region28: #{policy_forward.1} parent=0 // pred_region
    _
  $region29: #{policy_forward.1} parent=0 // pred_fallthru
    _
  %v26 = vld [vmem:[%s0] sm:$0xff]
  %v27 = vld [vmem:[%s0 + $0x8] sm:$0xff]
  %v28 = vld [vmem:[%s1] sm:$0xff]
  %v29 = vld [vmem:[%s1 + $0x8] sm:$0xff]
  %v30 = vld [vmem:[%s2 + $0x20] sm:$0x7]
  %v31 = vld [vmem:[%s2 + $0x40] sm:$0xff]
  %v32 = vld [vmem:[%s2 + $0x60] sm:$0x7f]
  %v33 = vld [vmem:[%s2 + $0x80] sm:$0x1f]
  %v34 = vld [vmem:[%s2 + $0x88] sm:$0x1f]
  %v35 = vld [vmem:[%s2 + $0x90] sm:$0x1f]
  %v36 = vld [vmem:[%s2 + $0x98] sm:$0x1f]
  %v37 = vld [vmem:[%s2] ss:$0 sm:$0xff]
  %v38 = vld [vmem:[%s2 + $0x1] ss:$0 sm:$0xff]
  %s39 = scalar_lea.vmem %s2, 2
  %v40 = vld [vmem:[%s39] ss:$8 sm:$0xf]
  %v41 = vld [vmem:[%s2 + $0x3] ss:$0 sm:$0xff]
  %s42 = scalar_lea.vmem %s2, 4
  %v43 = vld [vmem:[%s42] ss:$8 sm:$0xf]
  %v44 = vld [vmem:[%s2 + $0x5] ss:$0 sm:$0xff]
  %46 = vset.pattern.permute.xlu0 0
  %47 = vperm.xlu0 %46, %v26
  %v48 = vpop.permute.xlu0 %47
  %51 = vset.pattern.permute.xlu0 0
  %52 = vperm.xlu0 %51, %v27
  %v53 = vpop.permute.xlu0 %52
  %v55 = vperm.slane %v30, 0
  %v56 = vmul.f32 %v48, %v55
  %v57 = vmul.f32 %v53, %v55
  %58 = vset.pattern.permute.xlu0 1
  %59 = vperm.xlu0 %58, %v26
  %v60 = vpop.permute.xlu0 %59
  %62 = vset.pattern.permute.xlu0 1
  %63 = vperm.xlu0 %62, %v27
  %v64 = vpop.permute.xlu0 %63
  %v66 = vperm.slane %v30, 1
  %v67 = vmul.f32 %v60, %v66
  %v68 = vmul.f32 %v64, %v66
  %v69 = vadd.f32 %v56, %v67
  %v70 = vadd.f32 %v57, %v68
  %71 = vset.pattern.permute.xlu0 2
  %72 = vperm.xlu0 %71, %v26
  %v73 = vpop.permute.xlu0 %72
  %75 = vset.pattern.permute.xlu0 2
  %76 = vperm.xlu0 %75, %v27
  %v77 = vpop.permute.xlu0 %76
  %v79 = vperm.slane %v30, 2
  %v80 = vmul.f32 %v73, %v79
  %v81 = vmul.f32 %v77, %v79
  %v82 = vadd.f32 %v69, %v80
  %v83 = vadd.f32 %v70, %v81
  %v84 = vadd.f32 %v82, %v37
  %v85 = vadd.f32 %v83, %v37
  %v86 = vtanh.pop %v84
  %v87 = vtanh.pop %v85
  %vm88 = vcmask 121856
  %v90 = vsel %vm88, %v86, 0
  %v93 = vsel %vm88, %v87, 0
  %vm95 = vcmask 1046528
  %v97 = vsel %vm95, %v32, 0
  %99 = vmatpush.msra.mxu0 0.0
  %100 = vmatpush.msra.mxu0 0.0
  %101 = vmatpush.msra.mxu0 0.0
  %102 = vmatpush.msra.mxu0 0.0
  %103 = vmatpush.msra.mxu0 0.0
  %104 = vmatpush.msra.mxu0 0.0
  %105 = vmatpush.msra.mxu0 0.0
  %106 = vmatpush.msra.mxu0 0.0
  %107 = vmatpush.msra.mxu0 0.0
  %108 = vmatpush.msra.mxu0 0.0
  %109 = vmatpush.msra.mxu0 0.0
  %110 = vmatpush.msra.mxu0 0.0
  %111 = vmatpush.msra.mxu0 0.0
  %112 = vmatpush.msra.mxu0 0.0
  %113 = vmatpush.msra.mxu0 %v97
  %114 = vmatpush.msra.mxu0 %v31
  %115 = vmatmul.f32.gmra.mxu0 %v90
  %v116 = vpop.f32.mrf.mxu0
  %v117 = vadd.f32 %v38, %v116
  %118 = vmatmul.f32.gmra.mxu0 %v93
  %v119 = vpop.f32.mrf.mxu0
  %v120 = vadd.f32 %v38, %v119
  %121 = vdwg.mxu0
  %v122 = vld [vmem:[%s3] sm:$0xff]
  %v123 = vld [vmem:[%s3 + $0x8] sm:$0xff]
  %v124 = vld [vmem:[%s3 + $0x10] sm:$0xff]
  %v125 = vld [vmem:[%s3 + $0x18] sm:$0xff]
  %v126 = vld [vmem:[%s3 + $0x20] sm:$0xff]
  %v127 = vld [vmem:[%s3 + $0x28] sm:$0xff]
  %v128 = vld [vmem:[%s3 + $0x30] sm:$0xff]
  %v129 = vld [vmem:[%s3 + $0x38] sm:$0xff]
  %v130 = vld [vmem:[%s3 + $0x40] sm:$0xff]
  %v131 = vld [vmem:[%s3 + $0x48] sm:$0xff]
  %v132 = vld [vmem:[%s3 + $0x50] sm:$0xff]
  %v133 = vld [vmem:[%s3 + $0x58] sm:$0xff]
  %v135 = vperm.slane %v40, 0
  %v136 = vperm.slane %v40, 1
  %v137 = vperm.slane %v40, 2
  %v138 = vperm.slane %v40, 3
  %vm143 = vcmask 195584
  %v145 = vsel %vm143, %v28, 0
  %v148 = vsel %vm143, %v29, 0
  %150 = vmatpush.msra.mxu0 0.0
  %151 = vmatpush.msra.mxu0 0.0
  %152 = vmatpush.msra.mxu0 0.0
  %153 = vmatpush.msra.mxu0 0.0
  %154 = vmatpush.msra.mxu0 0.0
  %155 = vmatpush.msra.mxu0 0.0
  %156 = vmatpush.msra.mxu0 0.0
  %157 = vmatpush.msra.mxu0 0.0
  %158 = vmatpush.msra.mxu0 0.0
  %159 = vmatpush.msra.mxu0 0.0
  %160 = vmatpush.msra.mxu0 0.0
  %161 = vmatpush.msra.mxu0 0.0
  %162 = vmatpush.msra.mxu0 0.0
  %163 = vmatpush.msra.mxu0 %v130
  %164 = vmatpush.msra.mxu0 %v126
  %165 = vmatpush.msra.mxu0 %v122
  %166 = vmatmul.f32.gmra.mxu0 %v145
  %v167 = vpop.f32.mrf.mxu0
  %v168 = vadd.f32 %v135, %v167
  %169 = vmatmul.f32.gmra.mxu0 %v148
  %v170 = vpop.f32.mrf.mxu0
  %v171 = vadd.f32 %v135, %v170
  %172 = vdwg.mxu0
  %173 = vmatpush.msra.mxu0 0.0
  %174 = vmatpush.msra.mxu0 0.0
  %175 = vmatpush.msra.mxu0 0.0
  %176 = vmatpush.msra.mxu0 0.0
  %177 = vmatpush.msra.mxu0 0.0
  %178 = vmatpush.msra.mxu0 0.0
  %179 = vmatpush.msra.mxu0 0.0
  %180 = vmatpush.msra.mxu0 0.0
  %181 = vmatpush.msra.mxu0 0.0
  %182 = vmatpush.msra.mxu0 0.0
  %183 = vmatpush.msra.mxu0 0.0
  %184 = vmatpush.msra.mxu0 0.0
  %185 = vmatpush.msra.mxu0 0.0
  %186 = vmatpush.msra.mxu0 %v131
  %187 = vmatpush.msra.mxu0 %v127
  %188 = vmatpush.msra.mxu0 %v123
  %189 = vmatmul.f32.gmra.mxu0 %v145
  %v190 = vpop.f32.mrf.mxu0
  %v191 = vadd.f32 %v136, %v190
  %192 = vmatmul.f32.gmra.mxu0 %v148
  %v193 = vpop.f32.mrf.mxu0
  %v194 = vadd.f32 %v136, %v193
  %195 = vdwg.mxu0
  %196 = vmatpush.msra.mxu0 0.0
  %197 = vmatpush.msra.mxu0 0.0
  %198 = vmatpush.msra.mxu0 0.0
  %199 = vmatpush.msra.mxu0 0.0
  %200 = vmatpush.msra.mxu0 0.0
  %201 = vmatpush.msra.mxu0 0.0
  %202 = vmatpush.msra.mxu0 0.0
  %203 = vmatpush.msra.mxu0 0.0
  %204 = vmatpush.msra.mxu0 0.0
  %205 = vmatpush.msra.mxu0 0.0
  %206 = vmatpush.msra.mxu0 0.0
  %207 = vmatpush.msra.mxu0 0.0
  %208 = vmatpush.msra.mxu0 0.0
  %209 = vmatpush.msra.mxu0 %v132
  %210 = vmatpush.msra.mxu0 %v128
  %211 = vmatpush.msra.mxu0 %v124
  %212 = vmatmul.f32.gmra.mxu0 %v145
  %v213 = vpop.f32.mrf.mxu0
  %v214 = vadd.f32 %v137, %v213
  %215 = vmatmul.f32.gmra.mxu0 %v148
  %v216 = vpop.f32.mrf.mxu0
  %v217 = vadd.f32 %v137, %v216
  %218 = vdwg.mxu0
  %219 = vmatpush.msra.mxu0 0.0
  %220 = vmatpush.msra.mxu0 0.0
  %221 = vmatpush.msra.mxu0 0.0
  %222 = vmatpush.msra.mxu0 0.0
  %223 = vmatpush.msra.mxu0 0.0
  %224 = vmatpush.msra.mxu0 0.0
  %225 = vmatpush.msra.mxu0 0.0
  %226 = vmatpush.msra.mxu0 0.0
  %227 = vmatpush.msra.mxu0 0.0
  %228 = vmatpush.msra.mxu0 0.0
  %229 = vmatpush.msra.mxu0 0.0
  %230 = vmatpush.msra.mxu0 0.0
  %231 = vmatpush.msra.mxu0 0.0
  %232 = vmatpush.msra.mxu0 %v133
  %233 = vmatpush.msra.mxu0 %v129
  %234 = vmatpush.msra.mxu0 %v125
  %235 = vmatmul.f32.gmra.mxu0 %v145
  %v236 = vpop.f32.mrf.mxu0
  %v237 = vadd.f32 %v138, %v236
  %238 = vmatmul.f32.gmra.mxu0 %v148
  %v239 = vpop.f32.mrf.mxu0
  %v240 = vadd.f32 %v138, %v239
  %241 = vdwg.mxu0
  %v242 = vtanh.pop %v168
  %v243 = vtanh.pop %v191
  %v244 = vtanh.pop %v214
  %v245 = vtanh.pop %v237
  %v246 = vtanh.pop %v171
  %v247 = vtanh.pop %v194
  %v248 = vtanh.pop %v217
  %v249 = vtanh.pop %v240
  %v250 = vld [vmem:[%s4] sm:$0xff]
  %v251 = vld [vmem:[%s4 + $0x8] sm:$0xff]
  %v252 = vld [vmem:[%s4 + $0x10] sm:$0xff]
  %v253 = vld [vmem:[%s4 + $0x18] sm:$0xff]
  %v254 = vld [vmem:[%s4 + $0x20] sm:$0xff]
  %v255 = vld [vmem:[%s4 + $0x28] sm:$0xff]
  %v256 = vld [vmem:[%s4 + $0x30] sm:$0xff]
  %v257 = vld [vmem:[%s4 + $0x38] sm:$0xff]
  %v258 = vld [vmem:[%s4 + $0x40] sm:$0xff]
  %v259 = vld [vmem:[%s4 + $0x48] sm:$0xff]
  %v260 = vld [vmem:[%s4 + $0x50] sm:$0xff]
  %v261 = vld [vmem:[%s4 + $0x58] sm:$0xff]
  %v262 = vld [vmem:[%s4 + $0x60] sm:$0xff]
  %v263 = vld [vmem:[%s4 + $0x68] sm:$0xff]
  %v264 = vld [vmem:[%s4 + $0x70] sm:$0xff]
  %v265 = vld [vmem:[%s4 + $0x78] sm:$0xff]
  %v266 = vld [vmem:[%s4 + $0x80] sm:$0xff]
  %v267 = vld [vmem:[%s4 + $0x88] sm:$0xff]
  %v268 = vld [vmem:[%s4 + $0x90] sm:$0xff]
  %v269 = vld [vmem:[%s4 + $0x98] sm:$0xff]
  %v270 = vld [vmem:[%s4 + $0xa0] sm:$0xff]
  %v271 = vld [vmem:[%s4 + $0xa8] sm:$0xff]
  %v272 = vld [vmem:[%s4 + $0xb0] sm:$0xff]
  %v273 = vld [vmem:[%s4 + $0xb8] sm:$0xff]
  %v274 = vld [vmem:[%s4 + $0xc0] sm:$0xff]
  %v275 = vld [vmem:[%s4 + $0xc8] sm:$0xff]
  %v276 = vld [vmem:[%s4 + $0xd0] sm:$0xff]
  %v277 = vld [vmem:[%s4 + $0xd8] sm:$0xff]
  %v278 = vld [vmem:[%s4 + $0xe0] sm:$0xff]
  %v279 = vld [vmem:[%s4 + $0xe8] sm:$0xff]
  %v280 = vld [vmem:[%s4 + $0xf0] sm:$0xff]
  %v281 = vld [vmem:[%s4 + $0xf8] sm:$0xff]
  %v282 = vld [vmem:[%s4 + $0x100] sm:$0xff]
  %v283 = vld [vmem:[%s4 + $0x108] sm:$0xff]
  %v284 = vld [vmem:[%s4 + $0x110] sm:$0xff]
  %v285 = vld [vmem:[%s4 + $0x118] sm:$0xff]
  %v286 = vld [vmem:[%s4 + $0x120] sm:$0xff]
  %v287 = vld [vmem:[%s4 + $0x128] sm:$0xff]
  %v288 = vld [vmem:[%s4 + $0x130] sm:$0xff]
  %v289 = vld [vmem:[%s4 + $0x138] sm:$0xff]
  %v290 = vld [vmem:[%s4 + $0x140] sm:$0xff]
  %v291 = vld [vmem:[%s4 + $0x148] sm:$0xff]
  %v292 = vld [vmem:[%s4 + $0x150] sm:$0xff]
  %v293 = vld [vmem:[%s4 + $0x158] sm:$0xff]
  %v294 = vld [vmem:[%s4 + $0x160] sm:$0xff]
  %v295 = vld [vmem:[%s4 + $0x168] sm:$0xff]
  %v296 = vld [vmem:[%s4 + $0x170] sm:$0xff]
  %v297 = vld [vmem:[%s4 + $0x178] sm:$0xff]
  %v298 = vld [vmem:[%s4 + $0x180] sm:$0xff]
  %v299 = vld [vmem:[%s4 + $0x188] sm:$0xff]
  %v300 = vld [vmem:[%s4 + $0x190] sm:$0xff]
  %v301 = vld [vmem:[%s4 + $0x198] sm:$0xff]
  %v302 = vld [vmem:[%s4 + $0x1a0] sm:$0xff]
  %v303 = vld [vmem:[%s4 + $0x1a8] sm:$0xff]
  %v304 = vld [vmem:[%s4 + $0x1b0] sm:$0xff]
  %v305 = vld [vmem:[%s4 + $0x1b8] sm:$0xff]
  %v306 = vld [vmem:[%s4 + $0x1c0] sm:$0xff]
  %v307 = vld [vmem:[%s4 + $0x1c8] sm:$0xff]
  %v308 = vld [vmem:[%s4 + $0x1d0] sm:$0xff]
  %v309 = vld [vmem:[%s4 + $0x1d8] sm:$0xff]
  %v310 = vld [vmem:[%s4 + $0x1e0] sm:$0xff]
  %v311 = vld [vmem:[%s4 + $0x1e8] sm:$0xff]
  %v312 = vld [vmem:[%s4 + $0x1f0] sm:$0xff]
  %v313 = vld [vmem:[%s4 + $0x1f8] sm:$0xff]
  %314 = vmatpush.msra.mxu0 %v265
  %315 = vmatpush.msra.mxu0 %v264
  %316 = vmatpush.msra.mxu0 %v263
  %317 = vmatpush.msra.mxu0 %v262
  %318 = vmatpush.msra.mxu0 %v261
  %319 = vmatpush.msra.mxu0 %v260
  %320 = vmatpush.msra.mxu0 %v259
  %321 = vmatpush.msra.mxu0 %v258
  %322 = vmatpush.msra.mxu0 %v257
  %323 = vmatpush.msra.mxu0 %v256
  %324 = vmatpush.msra.mxu0 %v255
  %325 = vmatpush.msra.mxu0 %v254
  %326 = vmatpush.msra.mxu0 %v253
  %327 = vmatpush.msra.mxu0 %v252
  %328 = vmatpush.msra.mxu0 %v251
  %329 = vmatpush.msra.mxu0 %v250
  %330 = vmatmul.f32.gmra.mxu0 %v242
  %v331 = vpop.f32.mrf.mxu0
  %v332 = vadd.f32 %v41, %v331
  %333 = vmatmul.f32.gmra.mxu0 %v246
  %v334 = vpop.f32.mrf.mxu0
  %v335 = vadd.f32 %v41, %v334
  %336 = vdwg.mxu0
  %337 = vmatpush.msra.mxu0 %v281
  %338 = vmatpush.msra.mxu0 %v280
  %339 = vmatpush.msra.mxu0 %v279
  %340 = vmatpush.msra.mxu0 %v278
  %341 = vmatpush.msra.mxu0 %v277
  %342 = vmatpush.msra.mxu0 %v276
  %343 = vmatpush.msra.mxu0 %v275
  %344 = vmatpush.msra.mxu0 %v274
  %345 = vmatpush.msra.mxu0 %v273
  %346 = vmatpush.msra.mxu0 %v272
  %347 = vmatpush.msra.mxu0 %v271
  %348 = vmatpush.msra.mxu0 %v270
  %349 = vmatpush.msra.mxu0 %v269
  %350 = vmatpush.msra.mxu0 %v268
  %351 = vmatpush.msra.mxu0 %v267
  %352 = vmatpush.msra.mxu0 %v266
  %353 = vmatmul.f32.gmra.mxu0 %v243
  %v354 = vpop.f32.mrf.mxu0
  %v355 = vadd.f32 %v332, %v354
  %356 = vmatmul.f32.gmra.mxu0 %v247
  %v357 = vpop.f32.mrf.mxu0
  %v358 = vadd.f32 %v335, %v357
  %359 = vdwg.mxu0
  %360 = vmatpush.msra.mxu0 %v297
  %361 = vmatpush.msra.mxu0 %v296
  %362 = vmatpush.msra.mxu0 %v295
  %363 = vmatpush.msra.mxu0 %v294
  %364 = vmatpush.msra.mxu0 %v293
  %365 = vmatpush.msra.mxu0 %v292
  %366 = vmatpush.msra.mxu0 %v291
  %367 = vmatpush.msra.mxu0 %v290
  %368 = vmatpush.msra.mxu0 %v289
  %369 = vmatpush.msra.mxu0 %v288
  %370 = vmatpush.msra.mxu0 %v287
  %371 = vmatpush.msra.mxu0 %v286
  %372 = vmatpush.msra.mxu0 %v285
  %373 = vmatpush.msra.mxu0 %v284
  %374 = vmatpush.msra.mxu0 %v283
  %375 = vmatpush.msra.mxu0 %v282
  %376 = vmatmul.f32.gmra.mxu0 %v244
  %v377 = vpop.f32.mrf.mxu0
  %v378 = vadd.f32 %v355, %v377
  %379 = vmatmul.f32.gmra.mxu0 %v248
  %v380 = vpop.f32.mrf.mxu0
  %v381 = vadd.f32 %v358, %v380
  %382 = vdwg.mxu0
  %383 = vmatpush.msra.mxu0 %v313
  %384 = vmatpush.msra.mxu0 %v312
  %385 = vmatpush.msra.mxu0 %v311
  %386 = vmatpush.msra.mxu0 %v310
  %387 = vmatpush.msra.mxu0 %v309
  %388 = vmatpush.msra.mxu0 %v308
  %389 = vmatpush.msra.mxu0 %v307
  %390 = vmatpush.msra.mxu0 %v306
  %391 = vmatpush.msra.mxu0 %v305
  %392 = vmatpush.msra.mxu0 %v304
  %393 = vmatpush.msra.mxu0 %v303
  %394 = vmatpush.msra.mxu0 %v302
  %395 = vmatpush.msra.mxu0 %v301
  %396 = vmatpush.msra.mxu0 %v300
  %397 = vmatpush.msra.mxu0 %v299
  %398 = vmatpush.msra.mxu0 %v298
  %399 = vmatmul.f32.gmra.mxu0 %v245
  %v400 = vpop.f32.mrf.mxu0
  %v401 = vadd.f32 %v378, %v400
  %402 = vmatmul.f32.gmra.mxu0 %v249
  %v403 = vpop.f32.mrf.mxu0
  %v404 = vadd.f32 %v381, %v403
  %405 = vdwg.mxu0
  %v406 = vtanh.pop %v117
  %v407 = vtanh.pop %v120
  %v408 = vtanh.pop %v401
  %v409 = vtanh.pop %v404
  %v410 = vld [vmem:[%s5] sm:$0xff]
  %v411 = vld [vmem:[%s5 + $0x8] sm:$0xff]
  %v412 = vld [vmem:[%s5 + $0x10] sm:$0xff]
  %v413 = vld [vmem:[%s5 + $0x18] sm:$0xff]
  %v414 = vld [vmem:[%s5 + $0x20] sm:$0xff]
  %v415 = vld [vmem:[%s5 + $0x28] sm:$0xff]
  %v416 = vld [vmem:[%s5 + $0x30] sm:$0xff]
  %v417 = vld [vmem:[%s5 + $0x38] sm:$0xff]
  %v418 = vld [vmem:[%s5 + $0x40] sm:$0xff]
  %v419 = vld [vmem:[%s5 + $0x48] sm:$0xff]
  %v420 = vld [vmem:[%s5 + $0x50] sm:$0xff]
  %v421 = vld [vmem:[%s5 + $0x58] sm:$0xff]
  %v422 = vld [vmem:[%s5 + $0x60] sm:$0xff]
  %v423 = vld [vmem:[%s5 + $0x68] sm:$0xff]
  %v424 = vld [vmem:[%s5 + $0x70] sm:$0xff]
  %v425 = vld [vmem:[%s5 + $0x78] sm:$0xff]
  %v426 = vld [vmem:[%s5 + $0x80] sm:$0xff]
  %v427 = vld [vmem:[%s5 + $0x88] sm:$0xff]
  %v428 = vld [vmem:[%s5 + $0x90] sm:$0xff]
  %v429 = vld [vmem:[%s5 + $0x98] sm:$0xff]
  %v430 = vld [vmem:[%s5 + $0xa0] sm:$0xff]
  %v431 = vld [vmem:[%s5 + $0xa8] sm:$0xff]
  %v432 = vld [vmem:[%s5 + $0xb0] sm:$0xff]
  %v433 = vld [vmem:[%s5 + $0xb8] sm:$0xff]
  %v434 = vld [vmem:[%s5 + $0xc0] sm:$0xff]
  %v435 = vld [vmem:[%s5 + $0xc8] sm:$0xff]
  %v436 = vld [vmem:[%s5 + $0xd0] sm:$0xff]
  %v437 = vld [vmem:[%s5 + $0xd8] sm:$0xff]
  %v438 = vld [vmem:[%s5 + $0xe0] sm:$0xff]
  %v439 = vld [vmem:[%s5 + $0xe8] sm:$0xff]
  %v440 = vld [vmem:[%s5 + $0xf0] sm:$0xff]
  %v441 = vld [vmem:[%s5 + $0xf8] sm:$0xff]
  %v442 = vld [vmem:[%s5 + $0x100] sm:$0xff]
  %v443 = vld [vmem:[%s5 + $0x108] sm:$0xff]
  %v444 = vld [vmem:[%s5 + $0x110] sm:$0xff]
  %v445 = vld [vmem:[%s5 + $0x118] sm:$0xff]
  %v446 = vld [vmem:[%s5 + $0x120] sm:$0xff]
  %v447 = vld [vmem:[%s5 + $0x128] sm:$0xff]
  %v448 = vld [vmem:[%s5 + $0x130] sm:$0xff]
  %v449 = vld [vmem:[%s5 + $0x138] sm:$0xff]
  %v450 = vld [vmem:[%s5 + $0x140] sm:$0xff]
  %v451 = vld [vmem:[%s5 + $0x148] sm:$0xff]
  %v452 = vld [vmem:[%s5 + $0x150] sm:$0xff]
  %v453 = vld [vmem:[%s5 + $0x158] sm:$0xff]
  %v454 = vld [vmem:[%s5 + $0x160] sm:$0x7f]
  %v455 = vld [vmem:[%s5 + $0x168] sm:$0x7f]
  %v456 = vld [vmem:[%s5 + $0x170] sm:$0x7f]
  %v457 = vld [vmem:[%s5 + $0x178] sm:$0x7f]
  %vm458 = vcmask 777216
  %v460 = vsel %vm458, %v408, 0
  %v463 = vsel %vm458, %v409, 0
  %v466 = vsel %vm95, %v454, 0
  %v469 = vsel %vm95, %v455, 0
  %v472 = vsel %vm95, %v456, 0
  %v475 = vsel %vm95, %v457, 0
  %477 = vmatpush.msra.mxu0 0.0
  %478 = vmatpush.msra.mxu0 0.0
  %479 = vmatpush.msra.mxu0 0.0
  %480 = vmatpush.msra.mxu0 0.0
  %481 = vmatpush.msra.mxu0 %v466
  %482 = vmatpush.msra.mxu0 %v450
  %483 = vmatpush.msra.mxu0 %v446
  %484 = vmatpush.msra.mxu0 %v442
  %485 = vmatpush.msra.mxu0 %v438
  %486 = vmatpush.msra.mxu0 %v434
  %487 = vmatpush.msra.mxu0 %v430
  %488 = vmatpush.msra.mxu0 %v426
  %489 = vmatpush.msra.mxu0 %v422
  %490 = vmatpush.msra.mxu0 %v418
  %491 = vmatpush.msra.mxu0 %v414
  %492 = vmatpush.msra.mxu0 %v410
  %493 = vmatmul.f32.gmra.mxu0 %v460
  %v494 = vpop.f32.mrf.mxu0
  %v495 = vadd.f32 0.0, %v494
  %496 = vmatmul.f32.gmra.mxu0 %v463
  %v497 = vpop.f32.mrf.mxu0
  %v498 = vadd.f32 0.0, %v497
  %499 = vdwg.mxu0
  %500 = vmatpush.msra.mxu0 0.0
  %501 = vmatpush.msra.mxu0 0.0
  %502 = vmatpush.msra.mxu0 0.0
  %503 = vmatpush.msra.mxu0 0.0
  %504 = vmatpush.msra.mxu0 %v469
  %505 = vmatpush.msra.mxu0 %v451
  %506 = vmatpush.msra.mxu0 %v447
  %507 = vmatpush.msra.mxu0 %v443
  %508 = vmatpush.msra.mxu0 %v439
  %509 = vmatpush.msra.mxu0 %v435
  %510 = vmatpush.msra.mxu0 %v431
  %511 = vmatpush.msra.mxu0 %v427
  %512 = vmatpush.msra.mxu0 %v423
  %513 = vmatpush.msra.mxu0 %v419
  %514 = vmatpush.msra.mxu0 %v415
  %515 = vmatpush.msra.mxu0 %v411
  %516 = vmatmul.f32.gmra.mxu0 %v460
  %v517 = vpop.f32.mrf.mxu0
  %v518 = vadd.f32 0.0, %v517
  %519 = vmatmul.f32.gmra.mxu0 %v463
  %v520 = vpop.f32.mrf.mxu0
  %v521 = vadd.f32 0.0, %v520
  %522 = vdwg.mxu0
  %523 = vmatpush.msra.mxu0 0.0
  %524 = vmatpush.msra.mxu0 0.0
  %525 = vmatpush.msra.mxu0 0.0
  %526 = vmatpush.msra.mxu0 0.0
  %527 = vmatpush.msra.mxu0 %v472
  %528 = vmatpush.msra.mxu0 %v452
  %529 = vmatpush.msra.mxu0 %v448
  %530 = vmatpush.msra.mxu0 %v444
  %531 = vmatpush.msra.mxu0 %v440
  %532 = vmatpush.msra.mxu0 %v436
  %533 = vmatpush.msra.mxu0 %v432
  %534 = vmatpush.msra.mxu0 %v428
  %535 = vmatpush.msra.mxu0 %v424
  %536 = vmatpush.msra.mxu0 %v420
  %537 = vmatpush.msra.mxu0 %v416
  %538 = vmatpush.msra.mxu0 %v412
  %539 = vmatmul.f32.gmra.mxu0 %v460
  %v540 = vpop.f32.mrf.mxu0
  %v541 = vadd.f32 0.0, %v540
  %542 = vmatmul.f32.gmra.mxu0 %v463
  %v543 = vpop.f32.mrf.mxu0
  %v544 = vadd.f32 0.0, %v543
  %545 = vdwg.mxu0
  %546 = vmatpush.msra.mxu0 0.0
  %547 = vmatpush.msra.mxu0 0.0
  %548 = vmatpush.msra.mxu0 0.0
  %549 = vmatpush.msra.mxu0 0.0
  %550 = vmatpush.msra.mxu0 %v475
  %551 = vmatpush.msra.mxu0 %v453
  %552 = vmatpush.msra.mxu0 %v449
  %553 = vmatpush.msra.mxu0 %v445
  %554 = vmatpush.msra.mxu0 %v441
  %555 = vmatpush.msra.mxu0 %v437
  %556 = vmatpush.msra.mxu0 %v433
  %557 = vmatpush.msra.mxu0 %v429
  %558 = vmatpush.msra.mxu0 %v425
  %559 = vmatpush.msra.mxu0 %v421
  %560 = vmatpush.msra.mxu0 %v417
  %561 = vmatpush.msra.mxu0 %v413
  %562 = vmatmul.f32.gmra.mxu0 %v460
  %v563 = vpop.f32.mrf.mxu0
  %v564 = vadd.f32 0.0, %v563
  %565 = vmatmul.f32.gmra.mxu0 %v463
  %v566 = vpop.f32.mrf.mxu0
  %v567 = vadd.f32 0.0, %v566
  %568 = vdwg.mxu0
  %vm569 = vcmask 39936
  %v571 = vsel %vm569, %v406, 0
  %v574 = vsel %vm569, %v407, 0
  %vm576 = vcmask 1044480
  %v578 = vsel %vm576, %v33, 0
  %v581 = vsel %vm576, %v34, 0
  %v584 = vsel %vm576, %v35, 0
  %v587 = vsel %vm576, %v36, 0
  %589 = vmatpush.msra.mxu0 0.0
  %590 = vmatpush.msra.mxu0 0.0
  %591 = vmatpush.msra.mxu0 0.0
  %592 = vmatpush.msra.mxu0 0.0
  %593 = vmatpush.msra.mxu0 0.0
  %594 = vmatpush.msra.mxu0 0.0
  %595 = vmatpush.msra.mxu0 0.0
  %596 = vmatpush.msra.mxu0 0.0
  %597 = vmatpush.msra.mxu0 0.0
  %598 = vmatpush.msra.mxu0 0.0
  %599 = vmatpush.msra.mxu0 0.0
  %600 = vmatpush.msra.mxu0 0.0
  %601 = vmatpush.msra.mxu0 0.0
  %602 = vmatpush.msra.mxu0 0.0
  %603 = vmatpush.msra.mxu0 0.0
  %604 = vmatpush.msra.mxu0 %v578
  %605 = vmatmul.f32.gmra.mxu0 %v571
  %v606 = vpop.f32.mrf.mxu0
  %v607 = vadd.f32 %v495, %v606
  %608 = vmatmul.f32.gmra.mxu0 %v574
  %v609 = vpop.f32.mrf.mxu0
  %v610 = vadd.f32 %v498, %v609
  %611 = vdwg.mxu0
  %612 = vmatpush.msra.mxu0 0.0
  %613 = vmatpush.msra.mxu0 0.0
  %614 = vmatpush.msra.mxu0 0.0
  %615 = vmatpush.msra.mxu0 0.0
  %616 = vmatpush.msra.mxu0 0.0
  %617 = vmatpush.msra.mxu0 0.0
  %618 = vmatpush.msra.mxu0 0.0
  %619 = vmatpush.msra.mxu0 0.0
  %620 = vmatpush.msra.mxu0 0.0
  %621 = vmatpush.msra.mxu0 0.0
  %622 = vmatpush.msra.mxu0 0.0
  %623 = vmatpush.msra.mxu0 0.0
  %624 = vmatpush.msra.mxu0 0.0
  %625 = vmatpush.msra.mxu0 0.0
  %626 = vmatpush.msra.mxu0 0.0
  %627 = vmatpush.msra.mxu0 %v581
  %628 = vmatmul.f32.gmra.mxu0 %v571
  %v629 = vpop.f32.mrf.mxu0
  %v630 = vadd.f32 %v518, %v629
  %631 = vmatmul.f32.gmra.mxu0 %v574
  %v632 = vpop.f32.mrf.mxu0
  %v633 = vadd.f32 %v521, %v632
  %634 = vdwg.mxu0
  %635 = vmatpush.msra.mxu0 0.0
  %636 = vmatpush.msra.mxu0 0.0
  %637 = vmatpush.msra.mxu0 0.0
  %638 = vmatpush.msra.mxu0 0.0
  %639 = vmatpush.msra.mxu0 0.0
  %640 = vmatpush.msra.mxu0 0.0
  %641 = vmatpush.msra.mxu0 0.0
  %642 = vmatpush.msra.mxu0 0.0
  %643 = vmatpush.msra.mxu0 0.0
  %644 = vmatpush.msra.mxu0 0.0
  %645 = vmatpush.msra.mxu0 0.0
  %646 = vmatpush.msra.mxu0 0.0
  %647 = vmatpush.msra.mxu0 0.0
  %648 = vmatpush.msra.mxu0 0.0
  %649 = vmatpush.msra.mxu0 0.0
  %650 = vmatpush.msra.mxu0 %v584
  %651 = vmatmul.f32.gmra.mxu0 %v571
  %v652 = vpop.f32.mrf.mxu0
  %v653 = vadd.f32 %v541, %v652
  %654 = vmatmul.f32.gmra.mxu0 %v574
  %v655 = vpop.f32.mrf.mxu0
  %v656 = vadd.f32 %v544, %v655
  %657 = vdwg.mxu0
  %658 = vmatpush.msra.mxu0 0.0
  %659 = vmatpush.msra.mxu0 0.0
  %660 = vmatpush.msra.mxu0 0.0
  %661 = vmatpush.msra.mxu0 0.0
  %662 = vmatpush.msra.mxu0 0.0
  %663 = vmatpush.msra.mxu0 0.0
  %664 = vmatpush.msra.mxu0 0.0
  %665 = vmatpush.msra.mxu0 0.0
  %666 = vmatpush.msra.mxu0 0.0
  %667 = vmatpush.msra.mxu0 0.0
  %668 = vmatpush.msra.mxu0 0.0
  %669 = vmatpush.msra.mxu0 0.0
  %670 = vmatpush.msra.mxu0 0.0
  %671 = vmatpush.msra.mxu0 0.0
  %672 = vmatpush.msra.mxu0 0.0
  %673 = vmatpush.msra.mxu0 %v587
  %674 = vmatmul.f32.gmra.mxu0 %v571
  %v675 = vpop.f32.mrf.mxu0
  %v676 = vadd.f32 %v564, %v675
  %677 = vmatmul.f32.gmra.mxu0 %v574
  %v678 = vpop.f32.mrf.mxu0
  %v679 = vadd.f32 %v567, %v678
  %680 = vdwg.mxu0
  %v682 = vperm.slane %v43, 0
  %v683 = vperm.slane %v43, 1
  %v684 = vperm.slane %v43, 2
  %v685 = vperm.slane %v43, 3
  %v690 = vadd.f32 %v607, %v682
  %v691 = vadd.f32 %v630, %v683
  %v692 = vadd.f32 %v653, %v684
  %v693 = vadd.f32 %v676, %v685
  %v694 = vadd.f32 %v610, %v682
  %v695 = vadd.f32 %v633, %v683
  %v696 = vadd.f32 %v656, %v684
  %v697 = vadd.f32 %v679, %v685
  %v698 = vtanh.pop %v690
  %v699 = vtanh.pop %v691
  %v700 = vtanh.pop %v692
  %v701 = vtanh.pop %v693
  %v702 = vtanh.pop %v694
  %v703 = vtanh.pop %v695
  %v704 = vtanh.pop %v696
  %v705 = vtanh.pop %v697
  %v706 = vld [vmem:[%s6] sm:$0xff]
  %v707 = vld [vmem:[%s6 + $0x8] sm:$0xff]
  %v708 = vld [vmem:[%s6 + $0x10] sm:$0xff]
  %v709 = vld [vmem:[%s6 + $0x18] sm:$0xff]
  %v710 = vld [vmem:[%s6 + $0x20] sm:$0xff]
  %v711 = vld [vmem:[%s6 + $0x28] sm:$0xff]
  %v712 = vld [vmem:[%s6 + $0x30] sm:$0xff]
  %v713 = vld [vmem:[%s6 + $0x38] sm:$0xff]
  %v714 = vld [vmem:[%s6 + $0x40] sm:$0xff]
  %v715 = vld [vmem:[%s6 + $0x48] sm:$0xff]
  %v716 = vld [vmem:[%s6 + $0x50] sm:$0xff]
  %v717 = vld [vmem:[%s6 + $0x58] sm:$0xff]
  %v718 = vld [vmem:[%s6 + $0x60] sm:$0xff]
  %v719 = vld [vmem:[%s6 + $0x68] sm:$0xff]
  %v720 = vld [vmem:[%s6 + $0x70] sm:$0xff]
  %v721 = vld [vmem:[%s6 + $0x78] sm:$0xff]
  %v722 = vld [vmem:[%s6 + $0x80] sm:$0xff]
  %v723 = vld [vmem:[%s6 + $0x88] sm:$0xff]
  %v724 = vld [vmem:[%s6 + $0x90] sm:$0xff]
  %v725 = vld [vmem:[%s6 + $0x98] sm:$0xff]
  %v726 = vld [vmem:[%s6 + $0xa0] sm:$0xff]
  %v727 = vld [vmem:[%s6 + $0xa8] sm:$0xff]
  %v728 = vld [vmem:[%s6 + $0xb0] sm:$0xff]
  %v729 = vld [vmem:[%s6 + $0xb8] sm:$0xff]
  %v730 = vld [vmem:[%s6 + $0xc0] sm:$0xff]
  %v731 = vld [vmem:[%s6 + $0xc8] sm:$0xff]
  %v732 = vld [vmem:[%s6 + $0xd0] sm:$0xff]
  %v733 = vld [vmem:[%s6 + $0xd8] sm:$0xff]
  %v734 = vld [vmem:[%s6 + $0xe0] sm:$0xff]
  %v735 = vld [vmem:[%s6 + $0xe8] sm:$0xff]
  %v736 = vld [vmem:[%s6 + $0xf0] sm:$0xff]
  %v737 = vld [vmem:[%s6 + $0xf8] sm:$0xff]
  %v738 = vld [vmem:[%s6 + $0x100] sm:$0xff]
  %v739 = vld [vmem:[%s6 + $0x108] sm:$0xff]
  %v740 = vld [vmem:[%s6 + $0x110] sm:$0xff]
  %v741 = vld [vmem:[%s6 + $0x118] sm:$0xff]
  %v742 = vld [vmem:[%s6 + $0x120] sm:$0xff]
  %v743 = vld [vmem:[%s6 + $0x128] sm:$0xff]
  %v744 = vld [vmem:[%s6 + $0x130] sm:$0xff]
  %v745 = vld [vmem:[%s6 + $0x138] sm:$0xff]
  %v746 = vld [vmem:[%s6 + $0x140] sm:$0xff]
  %v747 = vld [vmem:[%s6 + $0x148] sm:$0xff]
  %v748 = vld [vmem:[%s6 + $0x150] sm:$0xff]
  %v749 = vld [vmem:[%s6 + $0x158] sm:$0xff]
  %v750 = vld [vmem:[%s6 + $0x160] sm:$0xff]
  %v751 = vld [vmem:[%s6 + $0x168] sm:$0xff]
  %v752 = vld [vmem:[%s6 + $0x170] sm:$0xff]
  %v753 = vld [vmem:[%s6 + $0x178] sm:$0xff]
  %v754 = vld [vmem:[%s6 + $0x180] sm:$0xff]
  %v755 = vld [vmem:[%s6 + $0x188] sm:$0xff]
  %vm756 = vcmask 130048
  %v758 = vsel %vm756, %v701, 0
  %v761 = vsel %vm756, %v705, 0
  %763 = vmatpush.msra.mxu0 %v721
  %764 = vmatpush.msra.mxu0 %v720
  %765 = vmatpush.msra.mxu0 %v719
  %766 = vmatpush.msra.mxu0 %v718
  %767 = vmatpush.msra.mxu0 %v717
  %768 = vmatpush.msra.mxu0 %v716
  %769 = vmatpush.msra.mxu0 %v715
  %770 = vmatpush.msra.mxu0 %v714
  %771 = vmatpush.msra.mxu0 %v713
  %772 = vmatpush.msra.mxu0 %v712
  %773 = vmatpush.msra.mxu0 %v711
  %774 = vmatpush.msra.mxu0 %v710
  %775 = vmatpush.msra.mxu0 %v709
  %776 = vmatpush.msra.mxu0 %v708
  %777 = vmatpush.msra.mxu0 %v707
  %778 = vmatpush.msra.mxu0 %v706
  %779 = vmatmul.f32.gmra.mxu0 %v698
  %v780 = vpop.f32.mrf.mxu0
  %v781 = vadd.f32 %v44, %v780
  %782 = vmatmul.f32.gmra.mxu0 %v702
  %v783 = vpop.f32.mrf.mxu0
  %v784 = vadd.f32 %v44, %v783
  %785 = vdwg.mxu0
  %786 = vmatpush.msra.mxu0 %v737
  %787 = vmatpush.msra.mxu0 %v736
  %788 = vmatpush.msra.mxu0 %v735
  %789 = vmatpush.msra.mxu0 %v734
  %790 = vmatpush.msra.mxu0 %v733
  %791 = vmatpush.msra.mxu0 %v732
  %792 = vmatpush.msra.mxu0 %v731
  %793 = vmatpush.msra.mxu0 %v730
  %794 = vmatpush.msra.mxu0 %v729
  %795 = vmatpush.msra.mxu0 %v728
  %796 = vmatpush.msra.mxu0 %v727
  %797 = vmatpush.msra.mxu0 %v726
  %798 = vmatpush.msra.mxu0 %v725
  %799 = vmatpush.msra.mxu0 %v724
  %800 = vmatpush.msra.mxu0 %v723
  %801 = vmatpush.msra.mxu0 %v722
  %802 = vmatmul.f32.gmra.mxu0 %v699
  %v803 = vpop.f32.mrf.mxu0
  %v804 = vadd.f32 %v781, %v803
  %805 = vmatmul.f32.gmra.mxu0 %v703
  %v806 = vpop.f32.mrf.mxu0
  %v807 = vadd.f32 %v784, %v806
  %808 = vdwg.mxu0
  %809 = vmatpush.msra.mxu0 %v753
  %810 = vmatpush.msra.mxu0 %v752
  %811 = vmatpush.msra.mxu0 %v751
  %812 = vmatpush.msra.mxu0 %v750
  %813 = vmatpush.msra.mxu0 %v749
  %814 = vmatpush.msra.mxu0 %v748
  %815 = vmatpush.msra.mxu0 %v747
  %816 = vmatpush.msra.mxu0 %v746
  %817 = vmatpush.msra.mxu0 %v745
  %818 = vmatpush.msra.mxu0 %v744
  %819 = vmatpush.msra.mxu0 %v743
  %820 = vmatpush.msra.mxu0 %v742
  %821 = vmatpush.msra.mxu0 %v741
  %822 = vmatpush.msra.mxu0 %v740
  %823 = vmatpush.msra.mxu0 %v739
  %824 = vmatpush.msra.mxu0 %v738
  %825 = vmatmul.f32.gmra.mxu0 %v700
  %v826 = vpop.f32.mrf.mxu0
  %v827 = vadd.f32 %v804, %v826
  %828 = vmatmul.f32.gmra.mxu0 %v704
  %v829 = vpop.f32.mrf.mxu0
  %v830 = vadd.f32 %v807, %v829
  %831 = vdwg.mxu0
  %832 = vmatpush.msra.mxu0 0.0
  %833 = vmatpush.msra.mxu0 0.0
  %834 = vmatpush.msra.mxu0 0.0
  %835 = vmatpush.msra.mxu0 0.0
  %836 = vmatpush.msra.mxu0 0.0
  %837 = vmatpush.msra.mxu0 0.0
  %838 = vmatpush.msra.mxu0 0.0
  %839 = vmatpush.msra.mxu0 0.0
  %840 = vmatpush.msra.mxu0 0.0
  %841 = vmatpush.msra.mxu0 0.0
  %842 = vmatpush.msra.mxu0 0.0
  %843 = vmatpush.msra.mxu0 0.0
  %844 = vmatpush.msra.mxu0 0.0
  %845 = vmatpush.msra.mxu0 0.0
  %846 = vmatpush.msra.mxu0 %v755
  %847 = vmatpush.msra.mxu0 %v754
  %848 = vmatmul.f32.gmra.mxu0 %v758
  %v849 = vpop.f32.mrf.mxu0
  %v850 = vadd.f32 %v827, %v849
  %851 = vmatmul.f32.gmra.mxu0 %v761
  %v852 = vpop.f32.mrf.mxu0
  %v853 = vadd.f32 %v830, %v852
  %854 = vdwg.mxu0
  %vm855 = vcmask 15360
  %856 = vst.msk [vmem:[%s7] sm:$0xff] %vm855, %v850
  %857 = vst.msk [vmem:[%s7 + $0x8] sm:$0xff] %vm855, %v853
  // Predicated region
  $region30: #{policy_forward.1} parent=0 // pred_check
    _
  $region31: #{policy_forward.1} parent=0 // pred_check_branch
    %859 = sbr.rel (0) target = $region33
  $region32: #{policy_forward.1} parent=0 // pred_region
    _
  $region33: #{policy_forward.1} parent=0 // pred_fallthru
    _
  // Predicated region
  $region34: #{policy_forward.1} parent=0 // pred_check
    _
  $region35: #{policy_forward.1} parent=0 // pred_check_branch
    %861 = sbr.rel (0) target = $region37
  $region36: #{policy_forward.1} parent=0 // pred_region
    _
  $region37: #{policy_forward.1} parent=0 // pred_fallthru
    _

</llo_original>
